<compile_context>
chip_gen: v5e
topology: v5e:2x2
jax: 0.10.0
libtpu: 0.0.40
codegen_flags: <defaults>
</compile_context>

<pallas_src>
import functools

import jax
import jax.numpy as jnp
from jax import lax
from jax.experimental import pallas as pl
from jax.experimental.pallas import tpu as pltpu

_LANES = 512          # lane-dense slab width (multiple of 128)
_MAX_ROW_BLOCK = 512  # 512 x 512 f32 tile = 1 MiB


def _inv_normal_cdf(p):
    """Acklam approximation of the standard-normal inverse CDF (float32)."""
    a = (-3.969683028665376e+01, 2.209460984245205e+02, -2.759285104469687e+02,
         1.383577518672690e+02, -3.066479806614716e+01, 2.506628277459239e+00)
    b = (-5.447609879822406e+01, 1.615858368580409e+02, -1.556989798598866e+02,
         6.680131188771972e+01, -1.328068155288572e+01)
    c = (-7.784894002430293e-03, -3.223964580411365e-01, -2.400758277161838e+00,
         -2.549732539343734e+00, 4.374664141464968e+00, 2.938163982698783e+00)
    d = (7.784695709041462e-03, 3.224671290700398e-01, 2.445134137142996e+00,
         3.754408661907416e+00)
    p_low = 0.02425

    # Central region.
    q = p - 0.5
    r = q * q
    num = ((((a[0] * r + a[1]) * r + a[2]) * r + a[3]) * r + a[4]) * r + a[5]
    den = ((((b[0] * r + b[1]) * r + b[2]) * r + b[3]) * r + b[4]) * r + 1.0
    z_central = q * num / den

    # Tails (symmetric): evaluate lower-tail formula on min(p, 1-p), flip sign.
    pt = jnp.minimum(p, 1.0 - p)
    qt = jnp.sqrt(-2.0 * jnp.log(pt))
    numt = ((((c[0] * qt + c[1]) * qt + c[2]) * qt + c[3]) * qt + c[4]) * qt + c[5]
    dent = (((d[0] * qt + d[1]) * qt + d[2]) * qt + d[3]) * qt + 1.0
    z_low = numt / dent                      # negative (lower-tail value)
    z_tail = jnp.where(p < 0.5, z_low, -z_low)

    return jnp.where(pt < p_low, z_tail, z_central)


def _noise_kernel(seed_ref, fstd_ref, x_ref, o_ref, *, f_mean, keep):
    """One (row_block, lanes) tile: generate N(0,1) noise and blend with x."""
    rb, lanes = x_ref.shape
    row0 = pl.program_id(0) * rb

    # Global linear index of every element in this tile (int32, wraps mod 2^32).
    rows = lax.broadcasted_iota(jnp.int32, (rb, lanes), 0) + row0
    cols = lax.broadcasted_iota(jnp.int32, (rb, lanes), 1)
    lin = rows * lanes + cols

    # Counter-based PRNG: seed-mix + murmur3 fmix32.  Logical right shifts are
    # emulated with (arithmetic >> k) & mask so everything stays in int32.
    h = lin ^ (seed_ref[0] * (-1640531527))          # 0x9E3779B9
    h = h ^ ((h >> 16) & 0xFFFF)
    h = h * (-2048144789)                            # 0x85EBCA6B
    h = h ^ ((h >> 13) & 0x7FFFF)
    h = h * (-1028477387)                            # 0xC2B2AE35
    h = h ^ ((h >> 16) & 0xFFFF)

    # 24 random bits -> uniform in (0, 1) -> standard normal via inverse CDF.
    m = h & 0x00FFFFFF
    p = (m.astype(jnp.float32) + 0.5) * (1.0 / 16777216.0)
    z = _inv_normal_cdf(p)

    # out = (1-f)*x + (f*std)*z + f*mean       (f*std is the runtime SMEM scalar)
    x = x_ref[...].astype(jnp.float32)
    o = keep * x + fstd_ref[0] * z + f_mean
    o_ref[...] = o.astype(o_ref.dtype)


def add_random_gaussian_noise(x, key, *, mean, std, fraction,
                              distribution="normal"):
    """JAX/Pallas equivalent of AddRandomGaussianNoise.forward (NCHW input)."""
    k_std, k_seed = jax.random.split(key)

    # Scalar std sampling (cheap glue, stays in plain JAX; no host sync needed).
    if distribution == "normal":
        s = std[0] + std[1] * jax.random.normal(k_std, (), dtype=jnp.float32)
        s = jax.nn.relu(s)
    elif distribution == "uniform":
        s = jax.random.uniform(k_std, (), dtype=jnp.float32,
                               minval=std[0], maxval=std[1])
    else:
        raise ValueError("Distribution should be either uniform or normal")

    orig_shape = x.shape
    total = x.size

    # Lane-dense slab layout: flatten to (rows, 512); pad rows to the row block.
    rows = -(-total // _LANES)
    row_block = min(_MAX_ROW_BLOCK, ((rows + 7) // 8) * 8)
    rows_pad = -(-rows // row_block) * row_block
    pad = rows_pad * _LANES - total

    x_flat = x.reshape(-1)
    if pad:
        x_flat = jnp.pad(x_flat, (0, pad))
    x2 = x_flat.reshape(rows_pad, _LANES)

    seed = jax.random.randint(k_seed, (1,), 0, 2**31 - 1, dtype=jnp.int32)
    f_std = (jnp.float32(fraction) * s).reshape(1).astype(jnp.float32)

    kernel = functools.partial(_noise_kernel,
                               f_mean=float(fraction * mean),
                               keep=float(1.0 - fraction))

    grid = (rows_pad // row_block,)
    out2 = pl.pallas_call(
        kernel,
        out_shape=jax.ShapeDtypeStruct((rows_pad, _LANES), x.dtype),
        grid=grid,
        in_specs=[
            pl.BlockSpec(memory_space=pltpu.MemorySpace.SMEM),   # seed scalar
            pl.BlockSpec(memory_space=pltpu.MemorySpace.SMEM),   # fraction*std
            pl.BlockSpec((row_block, _LANES), lambda i: (i, 0)),  # x tiles
        ],
        out_specs=pl.BlockSpec((row_block, _LANES), lambda i: (i, 0)),
        input_output_aliases={2: 0},   # x slab aliased to output slab
        compiler_params=pltpu.CompilerParams(
            dimension_semantics=("parallel",)),
    )(seed, f_std, x2)

    out_flat = out2.reshape(-1)
    if pad:
        out_flat = out_flat[:total]
    return out_flat.reshape(orig_shape)


if __name__ == "__main__":
    key = jax.random.PRNGKey(0)
    k_in, k_noise = jax.random.split(key)

    # Small NCHW input: batch=2, channels=4, spatial=16x16.
    x = jax.random.normal(k_in, (2, 4, 16, 16), dtype=jnp.float32)

    mean = 0.0
    std = (0.1, 0.05)   # (mean, std) of the std distribution for 'normal'
    fraction = 0.3

    y = add_random_gaussian_noise(x, k_noise, mean=mean, std=std,
                                  fraction=fraction, distribution="normal")
    y = jax.block_until_ready(y)

    assert y.shape == x.shape and y.dtype == x.dtype
    assert bool(jnp.all(jnp.isfinite(y)))
    # Output should stay close to (1-fraction)*x since the sampled std is small
    # (|z| <= ~5.4 and fraction*std <= ~0.1).
    ref_scale = (1.0 - fraction) * x
    assert float(jnp.max(jnp.abs(y - ref_scale))) < 1.0

    print("KERNEL_OK")
</pallas_src>

<mosaic_0001>
module attributes {stable_mosaic.version = 11 : i64} {
  func.func @_noise_kernel(%arg0: i32, %arg1: memref<1xi32, #tpu.memory_space<smem>>, %arg2: memref<1xf32, #tpu.memory_space<smem>>, %arg3: memref<8x512xf32, #tpu.memory_space<vmem>>, %arg4: memref<8x512xf32, #tpu.memory_space<vmem>>) attributes {dimension_semantics = [#tpu.dimension_semantics<parallel>], iteration_bounds = array<i64: 1>, scalar_prefetch = 0 : i64, scratch_operands = 0 : i64, tpu.core_type = #tpu.core_type<tc>, window_params = [{transform_indices = @transform_0, window_bounds = array<i64: 1>}, {transform_indices = @transform_1, window_bounds = array<i64: 1>}, {transform_indices = @transform_2, window_bounds = array<i64: 8, 512>}, {transform_indices = @transform_3, window_bounds = array<i64: 8, 512>}]} {
    %c8_i32 = arith.constant 8 : i32
    %0 = arith.muli %arg0, %c8_i32 : i32
    %1 = tpu.iota {dimensions = array<i32: 0>} : vector<8x512xi32>
    %2 = vector.broadcast %0 : i32 to vector<8x512xi32>
    %3 = arith.addi %1, %2 : vector<8x512xi32>
    %4 = tpu.iota {dimensions = array<i32: 1>} : vector<8x512xi32>
    %c512_i32 = arith.constant 512 : i32
    %5 = vector.broadcast %c512_i32 : i32 to vector<8x512xi32>
    %6 = arith.muli %3, %5 : vector<8x512xi32>
    %7 = arith.addi %6, %4 : vector<8x512xi32>
    %c0 = arith.constant 0 : index
    %8 = memref.load %arg1[%c0] : memref<1xi32, #tpu.memory_space<smem>>
    %c-1640531527_i32 = arith.constant -1640531527 : i32
    %9 = arith.muli %8, %c-1640531527_i32 : i32
    %10 = vector.broadcast %9 : i32 to vector<8x512xi32>
    %11 = arith.xori %7, %10 : vector<8x512xi32>
    %c16_i32 = arith.constant 16 : i32
    %12 = vector.broadcast %c16_i32 : i32 to vector<8x512xi32>
    %13 = arith.shrsi %11, %12 : vector<8x512xi32>
    %c65535_i32 = arith.constant 65535 : i32
    %14 = vector.broadcast %c65535_i32 : i32 to vector<8x512xi32>
    %15 = arith.andi %13, %14 : vector<8x512xi32>
    %16 = arith.xori %11, %15 : vector<8x512xi32>
    %c-2048144789_i32 = arith.constant -2048144789 : i32
    %17 = vector.broadcast %c-2048144789_i32 : i32 to vector<8x512xi32>
    %18 = arith.muli %16, %17 : vector<8x512xi32>
    %c13_i32 = arith.constant 13 : i32
    %19 = vector.broadcast %c13_i32 : i32 to vector<8x512xi32>
    %20 = arith.shrsi %18, %19 : vector<8x512xi32>
    %c524287_i32 = arith.constant 524287 : i32
    %21 = vector.broadcast %c524287_i32 : i32 to vector<8x512xi32>
    %22 = arith.andi %20, %21 : vector<8x512xi32>
    %23 = arith.xori %18, %22 : vector<8x512xi32>
    %c-1028477387_i32 = arith.constant -1028477387 : i32
    %24 = vector.broadcast %c-1028477387_i32 : i32 to vector<8x512xi32>
    %25 = arith.muli %23, %24 : vector<8x512xi32>
    %c16_i32_0 = arith.constant 16 : i32
    %26 = vector.broadcast %c16_i32_0 : i32 to vector<8x512xi32>
    %27 = arith.shrsi %25, %26 : vector<8x512xi32>
    %c65535_i32_1 = arith.constant 65535 : i32
    %28 = vector.broadcast %c65535_i32_1 : i32 to vector<8x512xi32>
    %29 = arith.andi %27, %28 : vector<8x512xi32>
    %30 = arith.xori %25, %29 : vector<8x512xi32>
    %c16777215_i32 = arith.constant 16777215 : i32
    %31 = vector.broadcast %c16777215_i32 : i32 to vector<8x512xi32>
    %32 = arith.andi %30, %31 : vector<8x512xi32>
    %33 = arith.sitofp %32 : vector<8x512xi32> to vector<8x512xf32>
    %cst = arith.constant 5.000000e-01 : f32
    %34 = vector.broadcast %cst : f32 to vector<8x512xf32>
    %35 = arith.addf %33, %34 : vector<8x512xf32>
    %cst_2 = arith.constant 5.96046448E-8 : f32
    %36 = vector.broadcast %cst_2 : f32 to vector<8x512xf32>
    %37 = arith.mulf %35, %36 : vector<8x512xf32>
    %cst_3 = arith.constant 5.000000e-01 : f32
    %38 = vector.broadcast %cst_3 : f32 to vector<8x512xf32>
    %39 = arith.subf %37, %38 : vector<8x512xf32>
    %40 = arith.mulf %39, %39 : vector<8x512xf32>
    %cst_4 = arith.constant -39.6968307 : f32
    %41 = vector.broadcast %cst_4 : f32 to vector<8x512xf32>
    %42 = arith.mulf %41, %40 : vector<8x512xf32>
    %cst_5 = arith.constant 220.946106 : f32
    %43 = vector.broadcast %cst_5 : f32 to vector<8x512xf32>
    %44 = arith.addf %42, %43 : vector<8x512xf32>
    %45 = arith.mulf %44, %40 : vector<8x512xf32>
    %cst_6 = arith.constant -275.928497 : f32
    %46 = vector.broadcast %cst_6 : f32 to vector<8x512xf32>
    %47 = arith.addf %45, %46 : vector<8x512xf32>
    %48 = arith.mulf %47, %40 : vector<8x512xf32>
    %cst_7 = arith.constant 138.357758 : f32
    %49 = vector.broadcast %cst_7 : f32 to vector<8x512xf32>
    %50 = arith.addf %48, %49 : vector<8x512xf32>
    %51 = arith.mulf %50, %40 : vector<8x512xf32>
    %cst_8 = arith.constant -30.6647987 : f32
    %52 = vector.broadcast %cst_8 : f32 to vector<8x512xf32>
    %53 = arith.addf %51, %52 : vector<8x512xf32>
    %54 = arith.mulf %53, %40 : vector<8x512xf32>
    %cst_9 = arith.constant 2.50662827 : f32
    %55 = vector.broadcast %cst_9 : f32 to vector<8x512xf32>
    %56 = arith.addf %54, %55 : vector<8x512xf32>
    %cst_10 = arith.constant -54.4760971 : f32
    %57 = vector.broadcast %cst_10 : f32 to vector<8x512xf32>
    %58 = arith.mulf %57, %40 : vector<8x512xf32>
    %cst_11 = arith.constant 161.585831 : f32
    %59 = vector.broadcast %cst_11 : f32 to vector<8x512xf32>
    %60 = arith.addf %58, %59 : vector<8x512xf32>
    %61 = arith.mulf %60, %40 : vector<8x512xf32>
    %cst_12 = arith.constant -155.698975 : f32
    %62 = vector.broadcast %cst_12 : f32 to vector<8x512xf32>
    %63 = arith.addf %61, %62 : vector<8x512xf32>
    %64 = arith.mulf %63, %40 : vector<8x512xf32>
    %cst_13 = arith.constant 66.8013153 : f32
    %65 = vector.broadcast %cst_13 : f32 to vector<8x512xf32>
    %66 = arith.addf %64, %65 : vector<8x512xf32>
    %67 = arith.mulf %66, %40 : vector<8x512xf32>
    %cst_14 = arith.constant -13.2806816 : f32
    %68 = vector.broadcast %cst_14 : f32 to vector<8x512xf32>
    %69 = arith.addf %67, %68 : vector<8x512xf32>
    %70 = arith.mulf %69, %40 : vector<8x512xf32>
    %cst_15 = arith.constant 1.000000e+00 : f32
    %71 = vector.broadcast %cst_15 : f32 to vector<8x512xf32>
    %72 = arith.addf %70, %71 : vector<8x512xf32>
    %73 = arith.mulf %39, %56 : vector<8x512xf32>
    %74 = arith.divf %73, %72 : vector<8x512xf32>
    %cst_16 = arith.constant 1.000000e+00 : f32
    %75 = vector.broadcast %cst_16 : f32 to vector<8x512xf32>
    %76 = arith.subf %75, %37 : vector<8x512xf32>
    %77 = arith.minimumf %37, %76 : vector<8x512xf32>
    %78 = math.log %77 : vector<8x512xf32>
    %cst_17 = arith.constant -2.000000e+00 : f32
    %79 = vector.broadcast %cst_17 : f32 to vector<8x512xf32>
    %80 = arith.mulf %79, %78 : vector<8x512xf32>
    %81 = math.sqrt %80 : vector<8x512xf32>
    %cst_18 = arith.constant -0.0077848942 : f32
    %82 = vector.broadcast %cst_18 : f32 to vector<8x512xf32>
    %83 = arith.mulf %82, %81 : vector<8x512xf32>
    %cst_19 = arith.constant -0.322396457 : f32
    %84 = vector.broadcast %cst_19 : f32 to vector<8x512xf32>
    %85 = arith.addf %83, %84 : vector<8x512xf32>
    %86 = arith.mulf %85, %81 : vector<8x512xf32>
    %cst_20 = arith.constant -2.40075827 : f32
    %87 = vector.broadcast %cst_20 : f32 to vector<8x512xf32>
    %88 = arith.addf %86, %87 : vector<8x512xf32>
    %89 = arith.mulf %88, %81 : vector<8x512xf32>
    %cst_21 = arith.constant -2.54973245 : f32
    %90 = vector.broadcast %cst_21 : f32 to vector<8x512xf32>
    %91 = arith.addf %89, %90 : vector<8x512xf32>
    %92 = arith.mulf %91, %81 : vector<8x512xf32>
    %cst_22 = arith.constant 4.37466431 : f32
    %93 = vector.broadcast %cst_22 : f32 to vector<8x512xf32>
    %94 = arith.addf %92, %93 : vector<8x512xf32>
    %95 = arith.mulf %94, %81 : vector<8x512xf32>
    %cst_23 = arith.constant 2.938164 : f32
    %96 = vector.broadcast %cst_23 : f32 to vector<8x512xf32>
    %97 = arith.addf %95, %96 : vector<8x512xf32>
    %cst_24 = arith.constant 0.00778469583 : f32
    %98 = vector.broadcast %cst_24 : f32 to vector<8x512xf32>
    %99 = arith.mulf %98, %81 : vector<8x512xf32>
    %cst_25 = arith.constant 0.322467119 : f32
    %100 = vector.broadcast %cst_25 : f32 to vector<8x512xf32>
    %101 = arith.addf %99, %100 : vector<8x512xf32>
    %102 = arith.mulf %101, %81 : vector<8x512xf32>
    %cst_26 = arith.constant 2.44513416 : f32
    %103 = vector.broadcast %cst_26 : f32 to vector<8x512xf32>
    %104 = arith.addf %102, %103 : vector<8x512xf32>
    %105 = arith.mulf %104, %81 : vector<8x512xf32>
    %cst_27 = arith.constant 3.7544086 : f32
    %106 = vector.broadcast %cst_27 : f32 to vector<8x512xf32>
    %107 = arith.addf %105, %106 : vector<8x512xf32>
    %108 = arith.mulf %107, %81 : vector<8x512xf32>
    %cst_28 = arith.constant 1.000000e+00 : f32
    %109 = vector.broadcast %cst_28 : f32 to vector<8x512xf32>
    %110 = arith.addf %108, %109 : vector<8x512xf32>
    %111 = arith.divf %97, %110 : vector<8x512xf32>
    %cst_29 = arith.constant 5.000000e-01 : f32
    %112 = vector.broadcast %cst_29 : f32 to vector<8x512xf32>
    %113 = arith.cmpf olt, %37, %112 : vector<8x512xf32>
    %cst_30 = arith.constant 0.000000e+00 : f32
    %114 = vector.broadcast %cst_30 : f32 to vector<8x512xf32>
    %115 = arith.subf %114, %111 : vector<8x512xf32>
    %116 = arith.select %113, %111, %115 : vector<8x512xi1>, vector<8x512xf32>
    %cst_31 = arith.constant 2.425000e-02 : f32
    %117 = vector.broadcast %cst_31 : f32 to vector<8x512xf32>
    %118 = arith.cmpf olt, %77, %117 : vector<8x512xf32>
    %119 = arith.select %118, %116, %74 : vector<8x512xi1>, vector<8x512xf32>
    %c0_32 = arith.constant 0 : index
    %c0_33 = arith.constant 0 : index
    %120 = vector.load %arg3[%c0_32, %c0_33] : memref<8x512xf32, #tpu.memory_space<vmem>>, vector<8x512xf32>
    %cst_34 = arith.constant 0.699999988 : f32
    %121 = vector.broadcast %cst_34 : f32 to vector<8x512xf32>
    %122 = arith.mulf %121, %120 : vector<8x512xf32>
    %c0_35 = arith.constant 0 : index
    %123 = memref.load %arg2[%c0_35] : memref<1xf32, #tpu.memory_space<smem>>
    %124 = vector.broadcast %123 : f32 to vector<8x512xf32>
    %125 = arith.mulf %124, %119 : vector<8x512xf32>
    %126 = arith.addf %122, %125 : vector<8x512xf32>
    %cst_36 = arith.constant 0.000000e+00 : f32
    %127 = vector.broadcast %cst_36 : f32 to vector<8x512xf32>
    %128 = arith.addf %126, %127 : vector<8x512xf32>
    %c0_37 = arith.constant 0 : index
    %c0_38 = arith.constant 0 : index
    %129 = vector.load %arg4[%c0_37, %c0_38] : memref<8x512xf32, #tpu.memory_space<vmem>>, vector<8x512xf32>
    tpu.vector_store %arg4[%c0_37, %c0_38], %128 {strides = array<i32>} : memref<8x512xf32, #tpu.memory_space<vmem>>, vector<8x512xf32>,
    return
  }
  func.func @transform_0(%arg0: i32) -> i32 {
    %c0_i32 = arith.constant 0 : i32
    %c0_i32_0 = arith.constant 0 : i32
    return %c0_i32 : i32
  }
  func.func @transform_1(%arg0: i32) -> i32 {
    %c0_i32 = arith.constant 0 : i32
    %c0_i32_0 = arith.constant 0 : i32
    return %c0_i32 : i32
  }
  func.func @transform_2(%arg0: i32) -> (i32, i32) {
    %c0_i32 = arith.constant 0 : i32
    %c0_i32_0 = arith.constant 0 : i32
    return %arg0, %c0_i32 : i32, i32
  }
  func.func @transform_3(%arg0: i32) -> (i32, i32) {
    %c0_i32 = arith.constant 0 : i32
    %c0_i32_0 = arith.constant 0 : i32
    return %arg0, %c0_i32 : i32, i32
  }
}

</mosaic_0001>

<llo_original>
// kernel: tpu_custom_call.1
$region0: #{tpu_custom_call.1}
  #allocation0 [shape = 'u32[]', space=smem, size = 0x4, offset = 0x4, fixed_abs, tag = 'smem constant byte address 0x4 - core index']
  #allocation1 [shape = 'u32[72,128]{1,0:T(1,128)}', space=vmem, size = 0x9000, scoped, tag = 'internal scratch']
  #allocation2 [shape = 's32[1]{0:T(128)S(6)}', space=smem, size = 0x200, scoped, tag = 'scoped memory for tpu_custom_call.1']
  #allocation3 [shape = 'f32[1]{0:T(128)S(6)}', space=smem, size = 0x200, scoped, tag = 'scoped memory for tpu_custom_call.1']
  %s0 = inlined_call_operand.<no memory space> [shape: s32[1], index: 0, kind: input, shape index: {}]
  %s1 = inlined_call_operand.<no memory space> [shape: f32[1], index: 1, kind: input, shape index: {}]
  %s2 = inlined_call_operand.hbm [shape: f32[8,512], index: 2, kind: input, shape index: {}, may-alias: {2,3}]
  %s3 = inlined_call_operand.hbm [shape: f32[8,512], index: 3, kind: output, shape index: {}, may-alias: {2,3}]
  %s4 = sld [smem:[#allocation0]]
  $region26: #{tpu_custom_call.1} parent=0
    _
  %s6 = ssub.s32 1, %s4
  %s7 = scalar_select 0, %s6, %s4
  %8 = sst [smem:[#allocation2]] %s0
  %9 = sst [smem:[#allocation3]] %s1
  $region1: #{tpu_custom_call.1} parent=0
    #allocation4 [shape = 'u8[16384]{0}', space=vmem, size = 0x4000, scoped, tag = 'input window, operand 2, single buffered']
    #allocation5 [shape = 's32[1]{0}', space=sflag, size = 0x4, scoped, tag = 'scoped memory for tpu_custom_call.1']
    #allocation6 [shape = 's32[1]{0}', space=sflag, size = 0x4, scoped, tag = 'scoped memory for tpu_custom_call.1']
    #allocation7 [shape = 'u8[16384]{0}', space=vmem, size = 0x4000, scoped, tag = 'output window, operand 0, single buffered']
    %10 = vsyncpa [#allocation5], 0
    %11 = vsyncpa [#allocation6], 0
    // Predicated region
    $region2: #{tpu_custom_call.1} parent=1 // pred_check
      _
    $region3: #{tpu_custom_call.1} parent=1 // pred_check_branch
      %13 = sbr.rel (0) target = $region5
    $region4: #{tpu_custom_call.1} parent=1 // pred_region
      _
    $region5: #{tpu_custom_call.1} parent=1 // pred_fallthru
      _
    // Predicated region
    $region6: #{tpu_custom_call.1} parent=1 // pred_check
      _
    $region7: #{tpu_custom_call.1} parent=1 // pred_check_branch
      %15 = sbr.rel (0) target = $region9
    $region8: #{tpu_custom_call.1} parent=1 // pred_region
      _
    $region9: #{tpu_custom_call.1} parent=1 // pred_fallthru
      _
    // Predicated region
    $region10: #{tpu_custom_call.1} parent=1 // pred_check
      _
    $region11: #{tpu_custom_call.1} parent=1 // pred_check_branch
      %17 = sbr.rel (0) target = $region13
    $region12: #{tpu_custom_call.1} parent=1 // pred_region
      %19 = vsyncadd [#allocation5], 0
      %s21 = sshll.u32 %s2, 4
      %s22 = int_to_ptr.hbm [resolvable:$true] %s21
      %s23 = sshll.u32 [#allocation4], 4
      %s24 = int_to_ptr.vmem [resolvable:$true] %s23
      %26 = dma.hbm_to_vmem [thread:$0]  %s22, 512, %s24, [#allocation5]
    $region13: #{tpu_custom_call.1} parent=1 // pred_fallthru
      _
    // Predicated region
    $region14: #{tpu_custom_call.1} parent=1 // pred_check
      _
    $region15: #{tpu_custom_call.1} parent=1 // pred_check_branch
      %28 = sbr.rel (0) target = $region17
    $region16: #{tpu_custom_call.1} parent=1 // pred_region
      %30 = dma.done [#allocation5], 512
    $region17: #{tpu_custom_call.1} parent=1 // pred_fallthru
      _
    %s31 = smul.u32 0, 8
    %v32 = vlaneseq
    %v33 = vshrl.u32 %v32, 7
    %v34 = vstv %s31
    %v35 = vadd.s32 %v33, %v34
    %v36 = vlaneseq
    %v37 = vand.u32 %v36, 127
    %v38 = vadd.s32 %v37, 128
    %v39 = vadd.s32 %v37, 256
    %v40 = vadd.s32 %v37, 384
    %v41 = vmul.u32 %v35, 512
    %v42 = vadd.s32 %v41, %v37
    %v43 = vadd.s32 %v41, %v38
    %v44 = vadd.s32 %v41, %v39
    %v45 = vadd.s32 %v41, %v40
    %s46 = sld [smem:[#allocation2]]
    %s47 = smul.u32 %s46, 2654435769
    %v48 = vstv %s47
    %v49 = vxor.u32 %v42, %v48
    %v50 = vxor.u32 %v43, %v48
    %v51 = vxor.u32 %v44, %v48
    %v52 = vxor.u32 %v45, %v48
    %v53 = vshra.s32 %v49, 16
    %v54 = vshra.s32 %v50, 16
    %v55 = vshra.s32 %v51, 16
    %v56 = vshra.s32 %v52, 16
    %v57 = vand.u32 %v53, 65535
    %v58 = vand.u32 %v54, 65535
    %v59 = vand.u32 %v55, 65535
    %v60 = vand.u32 %v56, 65535
    %v61 = vxor.u32 %v49, %v57
    %v62 = vxor.u32 %v50, %v58
    %v63 = vxor.u32 %v51, %v59
    %v64 = vxor.u32 %v52, %v60
    %v65 = vmul.u32 %v61, 2246822507
    %v66 = vmul.u32 %v62, 2246822507
    %v67 = vmul.u32 %v63, 2246822507
    %v68 = vmul.u32 %v64, 2246822507
    %v69 = vshra.s32 %v65, 13
    %v70 = vshra.s32 %v66, 13
    %v71 = vshra.s32 %v67, 13
    %v72 = vshra.s32 %v68, 13
    %v73 = vand.u32 %v69, 524287
    %v74 = vand.u32 %v70, 524287
    %v75 = vand.u32 %v71, 524287
    %v76 = vand.u32 %v72, 524287
    %v77 = vxor.u32 %v65, %v73
    %v78 = vxor.u32 %v66, %v74
    %v79 = vxor.u32 %v67, %v75
    %v80 = vxor.u32 %v68, %v76
    %v81 = vmul.u32 %v77, 3266489909
    %v82 = vmul.u32 %v78, 3266489909
    %v83 = vmul.u32 %v79, 3266489909
    %v84 = vmul.u32 %v80, 3266489909
    %v85 = vshra.s32 %v81, 16
    %v86 = vshra.s32 %v82, 16
    %v87 = vshra.s32 %v83, 16
    %v88 = vshra.s32 %v84, 16
    %v89 = vand.u32 %v85, 65535
    %v90 = vand.u32 %v86, 65535
    %v91 = vand.u32 %v87, 65535
    %v92 = vand.u32 %v88, 65535
    %v93 = vxor.u32 %v81, %v89
    %v94 = vxor.u32 %v82, %v90
    %v95 = vxor.u32 %v83, %v91
    %v96 = vxor.u32 %v84, %v92
    %v97 = vand.u32 %v93, 16777215
    %v98 = vand.u32 %v94, 16777215
    %v99 = vand.u32 %v95, 16777215
    %v100 = vand.u32 %v96, 16777215
    %v101 = vcvt.s32.f32 %v97
    %v102 = vcvt.s32.f32 %v98
    %v103 = vcvt.s32.f32 %v99
    %v104 = vcvt.s32.f32 %v100
    %v105 = vadd.f32 %v101, 0.5
    %v106 = vadd.f32 %v102, 0.5
    %v107 = vadd.f32 %v103, 0.5
    %v108 = vadd.f32 %v104, 0.5
    %v109 = vmul.f32 %v105, 5.9604645e-08
    %v110 = vmul.f32 %v106, 5.9604645e-08
    %v111 = vmul.f32 %v107, 5.9604645e-08
    %v112 = vmul.f32 %v108, 5.9604645e-08
    %v113 = vsub.f32 %v109, 0.5
    %v114 = vsub.f32 %v110, 0.5
    %v115 = vsub.f32 %v111, 0.5
    %v116 = vsub.f32 %v112, 0.5
    %v117 = vmul.f32 %v113, %v113
    %v118 = vmul.f32 %v114, %v114
    %v119 = vmul.f32 %v115, %v115
    %v120 = vmul.f32 %v116, %v116
    %v121 = vmul.f32 %v117, -39.69683
    %v122 = vmul.f32 %v118, -39.69683
    %v123 = vmul.f32 %v119, -39.69683
    %v124 = vmul.f32 %v120, -39.69683
    %v125 = vadd.f32 %v121, 220.9461
    %v126 = vadd.f32 %v122, 220.9461
    %v127 = vadd.f32 %v123, 220.9461
    %v128 = vadd.f32 %v124, 220.9461
    %v129 = vmul.f32 %v125, %v117
    %v130 = vmul.f32 %v126, %v118
    %v131 = vmul.f32 %v127, %v119
    %v132 = vmul.f32 %v128, %v120
    %v133 = vadd.f32 %v129, -275.9285
    %v134 = vadd.f32 %v130, -275.9285
    %v135 = vadd.f32 %v131, -275.9285
    %v136 = vadd.f32 %v132, -275.9285
    %v137 = vmul.f32 %v133, %v117
    %v138 = vmul.f32 %v134, %v118
    %v139 = vmul.f32 %v135, %v119
    %v140 = vmul.f32 %v136, %v120
    %v141 = vadd.f32 %v137, 138.35776
    %v142 = vadd.f32 %v138, 138.35776
    %v143 = vadd.f32 %v139, 138.35776
    %v144 = vadd.f32 %v140, 138.35776
    %v145 = vmul.f32 %v141, %v117
    %v146 = vmul.f32 %v142, %v118
    %v147 = vmul.f32 %v143, %v119
    %v148 = vmul.f32 %v144, %v120
    %v149 = vadd.f32 %v145, -30.664799
    %v150 = vadd.f32 %v146, -30.664799
    %v151 = vadd.f32 %v147, -30.664799
    %v152 = vadd.f32 %v148, -30.664799
    %v153 = vmul.f32 %v149, %v117
    %v154 = vmul.f32 %v150, %v118
    %v155 = vmul.f32 %v151, %v119
    %v156 = vmul.f32 %v152, %v120
    %v157 = vadd.f32 %v153, 2.5066283
    %v158 = vadd.f32 %v154, 2.5066283
    %v159 = vadd.f32 %v155, 2.5066283
    %v160 = vadd.f32 %v156, 2.5066283
    %v161 = vmul.f32 %v117, -54.476097
    %v162 = vmul.f32 %v118, -54.476097
    %v163 = vmul.f32 %v119, -54.476097
    %v164 = vmul.f32 %v120, -54.476097
    %v165 = vadd.f32 %v161, 161.58583
    %v166 = vadd.f32 %v162, 161.58583
    %v167 = vadd.f32 %v163, 161.58583
    %v168 = vadd.f32 %v164, 161.58583
    %v169 = vmul.f32 %v165, %v117
    %v170 = vmul.f32 %v166, %v118
    %v171 = vmul.f32 %v167, %v119
    %v172 = vmul.f32 %v168, %v120
    %v173 = vadd.f32 %v169, -155.69897
    %v174 = vadd.f32 %v170, -155.69897
    %v175 = vadd.f32 %v171, -155.69897
    %v176 = vadd.f32 %v172, -155.69897
    %v177 = vmul.f32 %v173, %v117
    %v178 = vmul.f32 %v174, %v118
    %v179 = vmul.f32 %v175, %v119
    %v180 = vmul.f32 %v176, %v120
    %v181 = vadd.f32 %v177, 66.801315
    %v182 = vadd.f32 %v178, 66.801315
    %v183 = vadd.f32 %v179, 66.801315
    %v184 = vadd.f32 %v180, 66.801315
    %v185 = vmul.f32 %v181, %v117
    %v186 = vmul.f32 %v182, %v118
    %v187 = vmul.f32 %v183, %v119
    %v188 = vmul.f32 %v184, %v120
    %v189 = vadd.f32 %v185, -13.280682
    %v190 = vadd.f32 %v186, -13.280682
    %v191 = vadd.f32 %v187, -13.280682
    %v192 = vadd.f32 %v188, -13.280682
    %v193 = vmul.f32 %v189, %v117
    %v194 = vmul.f32 %v190, %v118
    %v195 = vmul.f32 %v191, %v119
    %v196 = vmul.f32 %v192, %v120
    %v197 = vadd.f32 %v193, 1.0
    %v198 = vadd.f32 %v194, 1.0
    %v199 = vadd.f32 %v195, 1.0
    %v200 = vadd.f32 %v196, 1.0
    %v201 = vmul.f32 %v113, %v157
    %v202 = vmul.f32 %v114, %v158
    %v203 = vmul.f32 %v115, %v159
    %v204 = vmul.f32 %v116, %v160
    %v205 = vrcp.pop %v197
    %v206 = vmul.f32 %v197, %v205
    %v207 = vsub.f32 1.0, %v206
    %v208 = vmul.f32 %v205, %v207
    %v209 = vadd.f32 %v205, %v208
    %vm210 = vweird.f32 %v197
    %vm211 = vweird.f32 %v205
    %vm212 = vmor %vm210, %vm211
    %v213 = vsel %vm212, %v205, %v209
    %v214 = vand.u32 2147483647, %v197
    %vm215 = vcmp.eq.f32.partialorder %v214, 8.507059e+37
    %v216 = vand.u32 %v197, 2147483648
    %v217 = vor.u32 1.1754944e-38, %v216
    %v218 = vsel %vm215, %v217, %v213
    %v219 = vmul.f32 %v201, %v218
    %v220 = vrcp.pop %v198
    %v221 = vmul.f32 %v198, %v220
    %v222 = vsub.f32 1.0, %v221
    %v223 = vmul.f32 %v220, %v222
    %v224 = vadd.f32 %v220, %v223
    %vm225 = vweird.f32 %v198
    %vm226 = vweird.f32 %v220
    %vm227 = vmor %vm225, %vm226
    %v228 = vsel %vm227, %v220, %v224
    %v229 = vand.u32 2147483647, %v198
    %vm230 = vcmp.eq.f32.partialorder %v229, 8.507059e+37
    %v231 = vand.u32 %v198, 2147483648
    %v232 = vor.u32 1.1754944e-38, %v231
    %v233 = vsel %vm230, %v232, %v228
    %v234 = vmul.f32 %v202, %v233
    %v235 = vrcp.pop %v199
    %v236 = vmul.f32 %v199, %v235
    %v237 = vsub.f32 1.0, %v236
    %v238 = vmul.f32 %v235, %v237
    %v239 = vadd.f32 %v235, %v238
    %vm240 = vweird.f32 %v199
    %vm241 = vweird.f32 %v235
    %vm242 = vmor %vm240, %vm241
    %v243 = vsel %vm242, %v235, %v239
    %v244 = vand.u32 2147483647, %v199
    %vm245 = vcmp.eq.f32.partialorder %v244, 8.507059e+37
    %v246 = vand.u32 %v199, 2147483648
    %v247 = vor.u32 1.1754944e-38, %v246
    %v248 = vsel %vm245, %v247, %v243
    %v249 = vmul.f32 %v203, %v248
    %v250 = vrcp.pop %v200
    %v251 = vmul.f32 %v200, %v250
    %v252 = vsub.f32 1.0, %v251
    %v253 = vmul.f32 %v250, %v252
    %v254 = vadd.f32 %v250, %v253
    %vm255 = vweird.f32 %v200
    %vm256 = vweird.f32 %v250
    %vm257 = vmor %vm255, %vm256
    %v258 = vsel %vm257, %v250, %v254
    %v259 = vand.u32 2147483647, %v200
    %vm260 = vcmp.eq.f32.partialorder %v259, 8.507059e+37
    %v261 = vand.u32 %v200, 2147483648
    %v262 = vor.u32 1.1754944e-38, %v261
    %v263 = vsel %vm260, %v262, %v258
    %v264 = vmul.f32 %v204, %v263
    %v265 = vsub.f32 1.0, %v109
    %v266 = vsub.f32 1.0, %v110
    %v267 = vsub.f32 1.0, %v111
    %v268 = vsub.f32 1.0, %v112
    %v269 = vmin.f32 %v109, %v265
    %v270 = vmin.f32 %v110, %v266
    %v271 = vmin.f32 %v111, %v267
    %v272 = vmin.f32 %v112, %v268
    %v273 = vlog2.pop %v269
    %v274 = vmul.f32 %v273, 0.6931472
    %v275 = vlog2.pop %v270
    %v276 = vmul.f32 %v275, 0.6931472
    %v277 = vlog2.pop %v271
    %v278 = vmul.f32 %v277, 0.6931472
    %v279 = vlog2.pop %v272
    %v280 = vmul.f32 %v279, 0.6931472
    %v281 = vmul.f32 %v274, -2.0
    %v282 = vmul.f32 %v276, -2.0
    %v283 = vmul.f32 %v278, -2.0
    %v284 = vmul.f32 %v280, -2.0
    %v285 = vrsqrt.pop %v281
    %v286 = vmul.f32 %v285, %v281
    %v287 = vmul.f32 %v286, %v285
    %v288 = vmul.f32 0.5, %v287
    %v289 = vsub.f32 1.5, %v288
    %v290 = vmul.f32 %v285, %v289
    %v291 = vmul.f32 %v281, %v290
    %vm292 = vcmp.eq.f32.partialorder %v281, inf
    %v293 = vsel %vm292, %v281, %v291
    %vm294 = vcmp.eq.f32.partialorder %v281, 0.0
    %v295 = vand.u32 %v281, 2147483648
    %v296 = vsel %vm294, %v295, %v293
    %v297 = vrsqrt.pop %v282
    %v298 = vmul.f32 %v297, %v282
    %v299 = vmul.f32 %v298, %v297
    %v300 = vmul.f32 0.5, %v299
    %v301 = vsub.f32 1.5, %v300
    %v302 = vmul.f32 %v297, %v301
    %v303 = vmul.f32 %v282, %v302
    %vm304 = vcmp.eq.f32.partialorder %v282, inf
    %v305 = vsel %vm304, %v282, %v303
    %vm306 = vcmp.eq.f32.partialorder %v282, 0.0
    %v307 = vand.u32 %v282, 2147483648
    %v308 = vsel %vm306, %v307, %v305
    %v309 = vrsqrt.pop %v283
    %v310 = vmul.f32 %v309, %v283
    %v311 = vmul.f32 %v310, %v309
    %v312 = vmul.f32 0.5, %v311
    %v313 = vsub.f32 1.5, %v312
    %v314 = vmul.f32 %v309, %v313
    %v315 = vmul.f32 %v283, %v314
    %vm316 = vcmp.eq.f32.partialorder %v283, inf
    %v317 = vsel %vm316, %v283, %v315
    %vm318 = vcmp.eq.f32.partialorder %v283, 0.0
    %v319 = vand.u32 %v283, 2147483648
    %v320 = vsel %vm318, %v319, %v317
    %v321 = vrsqrt.pop %v284
    %v322 = vmul.f32 %v321, %v284
    %v323 = vmul.f32 %v322, %v321
    %v324 = vmul.f32 0.5, %v323
    %v325 = vsub.f32 1.5, %v324
    %v326 = vmul.f32 %v321, %v325
    %v327 = vmul.f32 %v284, %v326
    %vm328 = vcmp.eq.f32.partialorder %v284, inf
    %v329 = vsel %vm328, %v284, %v327
    %vm330 = vcmp.eq.f32.partialorder %v284, 0.0
    %v331 = vand.u32 %v284, 2147483648
    %v332 = vsel %vm330, %v331, %v329
    %v333 = vmul.f32 %v296, -0.007784894
    %v334 = vmul.f32 %v308, -0.007784894
    %v335 = vmul.f32 %v320, -0.007784894
    %v336 = vmul.f32 %v332, -0.007784894
    %v337 = vadd.f32 %v333, -0.32239646
    %v338 = vadd.f32 %v334, -0.32239646
    %v339 = vadd.f32 %v335, -0.32239646
    %v340 = vadd.f32 %v336, -0.32239646
    %v341 = vmul.f32 %v337, %v296
    %v342 = vmul.f32 %v338, %v308
    %v343 = vmul.f32 %v339, %v320
    %v344 = vmul.f32 %v340, %v332
    %v345 = vadd.f32 %v341, -2.4007583
    %v346 = vadd.f32 %v342, -2.4007583
    %v347 = vadd.f32 %v343, -2.4007583
    %v348 = vadd.f32 %v344, -2.4007583
    %v349 = vmul.f32 %v345, %v296
    %v350 = vmul.f32 %v346, %v308
    %v351 = vmul.f32 %v347, %v320
    %v352 = vmul.f32 %v348, %v332
    %v353 = vadd.f32 %v349, -2.5497324
    %v354 = vadd.f32 %v350, -2.5497324
    %v355 = vadd.f32 %v351, -2.5497324
    %v356 = vadd.f32 %v352, -2.5497324
    %v357 = vmul.f32 %v353, %v296
    %v358 = vmul.f32 %v354, %v308
    %v359 = vmul.f32 %v355, %v320
    %v360 = vmul.f32 %v356, %v332
    %v361 = vadd.f32 %v357, 4.3746643
    %v362 = vadd.f32 %v358, 4.3746643
    %v363 = vadd.f32 %v359, 4.3746643
    %v364 = vadd.f32 %v360, 4.3746643
    %v365 = vmul.f32 %v361, %v296
    %v366 = vmul.f32 %v362, %v308
    %v367 = vmul.f32 %v363, %v320
    %v368 = vmul.f32 %v364, %v332
    %v369 = vadd.f32 %v365, 2.938164
    %v370 = vadd.f32 %v366, 2.938164
    %v371 = vadd.f32 %v367, 2.938164
    %v372 = vadd.f32 %v368, 2.938164
    %v373 = vmul.f32 %v296, 0.007784696
    %v374 = vmul.f32 %v308, 0.007784696
    %v375 = vmul.f32 %v320, 0.007784696
    %v376 = vmul.f32 %v332, 0.007784696
    %v377 = vadd.f32 %v373, 0.32246712
    %v378 = vadd.f32 %v374, 0.32246712
    %v379 = vadd.f32 %v375, 0.32246712
    %v380 = vadd.f32 %v376, 0.32246712
    %v381 = vmul.f32 %v377, %v296
    %v382 = vmul.f32 %v378, %v308
    %v383 = vmul.f32 %v379, %v320
    %v384 = vmul.f32 %v380, %v332
    %v385 = vadd.f32 %v381, 2.4451342
    %v386 = vadd.f32 %v382, 2.4451342
    %v387 = vadd.f32 %v383, 2.4451342
    %v388 = vadd.f32 %v384, 2.4451342
    %v389 = vmul.f32 %v385, %v296
    %v390 = vmul.f32 %v386, %v308
    %v391 = vmul.f32 %v387, %v320
    %v392 = vmul.f32 %v388, %v332
    %v393 = vadd.f32 %v389, 3.7544086
    %v394 = vadd.f32 %v390, 3.7544086
    %v395 = vadd.f32 %v391, 3.7544086
    %v396 = vadd.f32 %v392, 3.7544086
    %v397 = vmul.f32 %v393, %v296
    %v398 = vmul.f32 %v394, %v308
    %v399 = vmul.f32 %v395, %v320
    %v400 = vmul.f32 %v396, %v332
    %v401 = vadd.f32 %v397, 1.0
    %v402 = vadd.f32 %v398, 1.0
    %v403 = vadd.f32 %v399, 1.0
    %v404 = vadd.f32 %v400, 1.0
    %v405 = vrcp.pop %v401
    %v406 = vmul.f32 %v401, %v405
    %v407 = vsub.f32 1.0, %v406
    %v408 = vmul.f32 %v405, %v407
    %v409 = vadd.f32 %v405, %v408
    %vm410 = vweird.f32 %v401
    %vm411 = vweird.f32 %v405
    %vm412 = vmor %vm410, %vm411
    %v413 = vsel %vm412, %v405, %v409
    %v414 = vand.u32 2147483647, %v401
    %vm415 = vcmp.eq.f32.partialorder %v414, 8.507059e+37
    %v416 = vand.u32 %v401, 2147483648
    %v417 = vor.u32 1.1754944e-38, %v416
    %v418 = vsel %vm415, %v417, %v413
    %v419 = vmul.f32 %v369, %v418
    %v420 = vrcp.pop %v402
    %v421 = vmul.f32 %v402, %v420
    %v422 = vsub.f32 1.0, %v421
    %v423 = vmul.f32 %v420, %v422
    %v424 = vadd.f32 %v420, %v423
    %vm425 = vweird.f32 %v402
    %vm426 = vweird.f32 %v420
    %vm427 = vmor %vm425, %vm426
    %v428 = vsel %vm427, %v420, %v424
    %v429 = vand.u32 2147483647, %v402
    %vm430 = vcmp.eq.f32.partialorder %v429, 8.507059e+37
    %v431 = vand.u32 %v402, 2147483648
    %v432 = vor.u32 1.1754944e-38, %v431
    %v433 = vsel %vm430, %v432, %v428
    %v434 = vmul.f32 %v370, %v433
    %v435 = vrcp.pop %v403
    %v436 = vmul.f32 %v403, %v435
    %v437 = vsub.f32 1.0, %v436
    %v438 = vmul.f32 %v435, %v437
    %v439 = vadd.f32 %v435, %v438
    %vm440 = vweird.f32 %v403
    %vm441 = vweird.f32 %v435
    %vm442 = vmor %vm440, %vm441
    %v443 = vsel %vm442, %v435, %v439
    %v444 = vand.u32 2147483647, %v403
    %vm445 = vcmp.eq.f32.partialorder %v444, 8.507059e+37
    %v446 = vand.u32 %v403, 2147483648
    %v447 = vor.u32 1.1754944e-38, %v446
    %v448 = vsel %vm445, %v447, %v443
    %v449 = vmul.f32 %v371, %v448
    %v450 = vrcp.pop %v404
    %v451 = vmul.f32 %v404, %v450
    %v452 = vsub.f32 1.0, %v451
    %v453 = vmul.f32 %v450, %v452
    %v454 = vadd.f32 %v450, %v453
    %vm455 = vweird.f32 %v404
    %vm456 = vweird.f32 %v450
    %vm457 = vmor %vm455, %vm456
    %v458 = vsel %vm457, %v450, %v454
    %v459 = vand.u32 2147483647, %v404
    %vm460 = vcmp.eq.f32.partialorder %v459, 8.507059e+37
    %v461 = vand.u32 %v404, 2147483648
    %v462 = vor.u32 1.1754944e-38, %v461
    %v463 = vsel %vm460, %v462, %v458
    %v464 = vmul.f32 %v372, %v463
    %vm465 = vcmp.lt.f32.partialorder %v109, 0.5
    %vm466 = vcmp.lt.f32.partialorder %v110, 0.5
    %vm467 = vcmp.lt.f32.partialorder %v111, 0.5
    %vm468 = vcmp.lt.f32.partialorder %v112, 0.5
    %v469 = vsub.f32 0.0, %v419
    %v470 = vsub.f32 0.0, %v434
    %v471 = vsub.f32 0.0, %v449
    %v472 = vsub.f32 0.0, %v464
    %v473 = vsel %vm465, %v419, %v469
    %v474 = vsel %vm466, %v434, %v470
    %v475 = vsel %vm467, %v449, %v471
    %v476 = vsel %vm468, %v464, %v472
    %vm477 = vcmp.lt.f32.partialorder %v269, 0.02425
    %vm478 = vcmp.lt.f32.partialorder %v270, 0.02425
    %vm479 = vcmp.lt.f32.partialorder %v271, 0.02425
    %vm480 = vcmp.lt.f32.partialorder %v272, 0.02425
    %v481 = vsel %vm477, %v473, %v219
    %v482 = vsel %vm478, %v474, %v234
    %v483 = vsel %vm479, %v475, %v249
    %v484 = vsel %vm480, %v476, %v264
    %v485 = vld [vmem:[#allocation4] sm:$0xff]
    %v486 = vld [vmem:[#allocation4 + $0x8] sm:$0xff]
    %v487 = vld [vmem:[#allocation4 + $0x10] sm:$0xff]
    %v488 = vld [vmem:[#allocation4 + $0x18] sm:$0xff]
    %v489 = vmul.f32 %v485, 0.7
    %v490 = vmul.f32 %v486, 0.7
    %v491 = vmul.f32 %v487, 0.7
    %v492 = vmul.f32 %v488, 0.7
    %s493 = sld [smem:[#allocation3]]
    %v494 = vstv %s493
    %v495 = vmul.f32 %v494, %v481
    %v496 = vmul.f32 %v494, %v482
    %v497 = vmul.f32 %v494, %v483
    %v498 = vmul.f32 %v494, %v484
    %v499 = vadd.f32 %v489, %v495
    %v500 = vadd.f32 %v490, %v496
    %v501 = vadd.f32 %v491, %v497
    %v502 = vadd.f32 %v492, %v498
    %v503 = vadd.f32 %v499, 0.0
    %v504 = vadd.f32 %v500, 0.0
    %v505 = vadd.f32 %v501, 0.0
    %v506 = vadd.f32 %v502, 0.0
    %507 = vst [vmem:[#allocation7] sm:$0xff] %v503
    %508 = vst [vmem:[#allocation7 + $0x8] sm:$0xff] %v504
    %509 = vst [vmem:[#allocation7 + $0x10] sm:$0xff] %v505
    %510 = vst [vmem:[#allocation7 + $0x18] sm:$0xff] %v506
    // Predicated region
    $region18: #{tpu_custom_call.1} parent=1 // pred_check
      _
    $region19: #{tpu_custom_call.1} parent=1 // pred_check_branch
      %512 = sbr.rel (0) target = $region21
    $region20: #{tpu_custom_call.1} parent=1 // pred_region
      %514 = vsyncadd [#allocation6], 0
      %s516 = sshll.u32 [#allocation7], 4
      %s517 = int_to_ptr.vmem [resolvable:$true] %s516
      %s518 = sshll.u32 %s3, 4
      %s519 = int_to_ptr.hbm [resolvable:$true] %s518
      %521 = dma.vmem_to_hbm [thread:$0]  %s517, 512, %s519, [#allocation6]
    $region21: #{tpu_custom_call.1} parent=1 // pred_fallthru
      _
    // Predicated region
    $region22: #{tpu_custom_call.1} parent=1 // pred_check
      _
    $region23: #{tpu_custom_call.1} parent=1 // pred_check_branch
      %523 = sbr.rel (0) target = $region25
    $region24: #{tpu_custom_call.1} parent=1 // pred_region
      %525 = dma.done [#allocation6], 512
    $region25: #{tpu_custom_call.1} parent=1 // pred_fallthru
      _
    %526 = vsyncpa [#allocation5], 1
    %527 = vsyncpa [#allocation6], 1

</llo_original>
